<compile_context>
chip_gen: v7x
topology: tpu7x:2x2x1
jax: 0.10.0
libtpu: 0.0.40
codegen_flags: <defaults>
</compile_context>

<pallas_src>
import functools

import jax
import jax.numpy as jnp
from jax.experimental import pallas as pl
from jax.experimental.pallas import tpu as pltpu


def _round_up(x, m):
    return (x + m - 1) // m * m


def _qlora_kernel(x_ref, wt_ref, at_ref, bt_ref, o_ref, acc_ref, a_ref, *,
                  alpha, tk):
    # x_ref:  (tm, tk)            input tile
    # wt_ref: (tk, tn)            frozen W^T tile
    # at_ref: (K_pad, rank_pad)   full LoRA A^T (constant block index -> loaded once)
    # bt_ref: (rank_pad, tn)      LoRA B^T tile
    # acc_ref:(tm, tn) f32        frozen-path accumulator
    # a_ref:  (tm, rank_pad) f32  x @ A^T accumulator (carried across j)
    j = pl.program_id(1)
    k = pl.program_id(2)
    nk = pl.num_programs(2)

    @pl.when(k == 0)
    def _init_acc():
        acc_ref[...] = jnp.zeros_like(acc_ref)

    @pl.when((j == 0) & (k == 0))
    def _init_a():
        a_ref[...] = jnp.zeros_like(a_ref)

    x = x_ref[...]

    # Frozen base path: accumulate x @ W^T in f32 on the MXU.
    acc_ref[...] += jnp.dot(x, wt_ref[...], preferred_element_type=jnp.float32)

    # LoRA A path: computed only for the first out_dim tile (j == 0) of each
    # row block, then reused for all j (avoids re-doing x @ A^T per out tile).
    @pl.when(j == 0)
    def _lora_a():
        k_off = pl.multiple_of(k * tk, tk)
        at_k = at_ref[pl.ds(k_off, tk), :]
        a_ref[...] += jnp.dot(x, at_k, preferred_element_type=jnp.float32)

    # Finalize: add the (tiny) LoRA B matmul and write the output tile once.
    @pl.when(k == nk - 1)
    def _finalize():
        lora = jnp.dot(a_ref[...].astype(bt_ref.dtype), bt_ref[...],
                       preferred_element_type=jnp.float32)
        o_ref[...] = (acc_ref[...] + alpha * lora).astype(o_ref.dtype)


def qlora_prepare(w, lora_a, lora_b, alpha, *, tn=512, tk=512):
    """One-time weight preparation, hoisted out of the forward path.

    Transposes the PyTorch-layout (frozen) weights into row-major matmul
    layout and zero-pads every dimension to tile / (8,128)-lane multiples.
    Do this once at load time -- XLA cannot fuse a transpose into the Pallas
    custom call, so doing it per forward would re-stream W through HBM.
    """
    out_dim, in_dim = w.shape
    rank = lora_a.shape[0]
    assert lora_a.shape == (rank, in_dim)
    assert lora_b.shape == (out_dim, rank)

    tk = min(tk, _round_up(in_dim, 128))
    tn = min(tn, _round_up(out_dim, 128))
    k_pad = _round_up(in_dim, tk)
    n_pad = _round_up(out_dim, tn)
    r_pad = _round_up(rank, 128)   # lane-dense LoRA rank (zero padding is exact)

    wt = jnp.zeros((k_pad, n_pad), w.dtype).at[:in_dim, :out_dim].set(w.T)
    at = jnp.zeros((k_pad, r_pad), lora_a.dtype).at[:in_dim, :rank].set(lora_a.T)
    bt = jnp.zeros((r_pad, n_pad), lora_b.dtype).at[:rank, :out_dim].set(lora_b.T)

    return dict(wt=wt, at=at, bt=bt, alpha=float(alpha),
                in_dim=in_dim, out_dim=out_dim, rank=rank, tk=tk, tn=tn)


def qlora_linear(x, params, *, tm=256):
    """Forward pass: x (..., in_dim) -> (..., out_dim)."""
    wt, at, bt = params["wt"], params["at"], params["bt"]
    in_dim, out_dim = params["in_dim"], params["out_dim"]
    tk, tn = params["tk"], params["tn"]
    alpha = params["alpha"]

    k_pad, n_pad = wt.shape
    r_pad = at.shape[1]

    lead = x.shape[:-1]
    x2 = x.reshape(-1, in_dim)
    m = x2.shape[0]
    tm = min(tm, _round_up(m, 8))
    m_pad = _round_up(m, tm)

    xp = x2
    if (m_pad, k_pad) != (m, in_dim):
        xp = jnp.zeros((m_pad, k_pad), x2.dtype).at[:m, :in_dim].set(x2)

    grid = (m_pad // tm, n_pad // tn, k_pad // tk)

    # Explicit VMEM budget: double-buffered tiles + f32 scratch, with headroom,
    # capped at v7x's 64 MiB physical VMEM per TensorCore.
    def _isz(a):
        return jnp.dtype(a.dtype).itemsize

    vmem_need = (2 * (tm * tk * _isz(xp) + tk * tn * _isz(wt)
                      + k_pad * r_pad * _isz(at) + r_pad * tn * _isz(bt)
                      + tm * tn * _isz(xp))
                 + 4 * (tm * tn + tm * r_pad))
    vmem_limit = int(min(64 * 1024 * 1024,
                         max(32 * 1024 * 1024, 2 * vmem_need)))

    rank = params["rank"]
    flops = 2 * m * in_dim * out_dim + 2 * m * rank * (in_dim + out_dim)
    bytes_accessed = (xp.size * _isz(xp) + wt.size * _isz(wt)
                      + at.size * _isz(at) + bt.size * _isz(bt)
                      + m_pad * n_pad * _isz(xp))

    kernel = functools.partial(_qlora_kernel, alpha=alpha, tk=tk)

    out = pl.pallas_call(
        kernel,
        out_shape=jax.ShapeDtypeStruct((m_pad, n_pad), x.dtype),
        grid_spec=pltpu.PrefetchScalarGridSpec(
            num_scalar_prefetch=0,
            grid=grid,
            in_specs=[
                pl.BlockSpec((tm, tk), lambda i, j, k: (i, k)),        # x tile
                pl.BlockSpec((tk, tn), lambda i, j, k: (k, j)),        # W^T tile
                pl.BlockSpec((k_pad, r_pad), lambda i, j, k: (0, 0)),  # A^T (full, loaded once)
                pl.BlockSpec((r_pad, tn), lambda i, j, k: (0, j)),     # B^T tile
            ],
            out_specs=pl.BlockSpec((tm, tn), lambda i, j, k: (i, j)),
            scratch_shapes=[
                pltpu.VMEM((tm, tn), jnp.float32),     # frozen accumulator
                pltpu.VMEM((tm, r_pad), jnp.float32),  # x @ A^T accumulator
            ],
        ),
        compiler_params=pltpu.CompilerParams(
            # i shards across TensorCores; j must stay "arbitrary" because the
            # x@A^T scratch is carried across out_dim tiles; k is the reduction.
            dimension_semantics=("parallel", "arbitrary", "arbitrary"),
            vmem_limit_bytes=vmem_limit,
        ),
        cost_estimate=pl.CostEstimate(flops=flops, transcendentals=0,
                                      bytes_accessed=bytes_accessed),
    )(xp, wt, at, bt)

    return out[:m, :out_dim].reshape(*lead, out_dim)


def _reference(x, w, lora_a, lora_b, alpha):
    return x @ w.T + alpha * ((x @ lora_a.T) @ lora_b.T)


if __name__ == "__main__":
    # --- Test 1: shapes implied by the module's forward (tiny, single tile). --
    batch, seq = 2, 8
    in_dim, out_dim, rank = 32, 32, 4
    alpha = 16.0

    key = jax.random.PRNGKey(0)
    kx, kw, ka, kb = jax.random.split(key, 4)
    x = jax.random.normal(kx, (batch, seq, in_dim), dtype=jnp.float32)
    w = jax.random.normal(kw, (out_dim, in_dim), dtype=jnp.float32) * 0.05
    lora_a = jax.random.normal(ka, (rank, in_dim), dtype=jnp.float32) * 0.05
    lora_b = jax.random.normal(kb, (out_dim, rank), dtype=jnp.float32) * 0.05

    params = qlora_prepare(w, lora_a, lora_b, alpha)   # one-time weight prep
    out = jax.block_until_ready(qlora_linear(x, params))

    ref = _reference(x, w, lora_a, lora_b, alpha)
    assert out.shape == ref.shape
    assert jnp.allclose(out, ref, atol=1e-4, rtol=1e-4)

    # --- Test 2: exercise a multi-tile grid (ragged M, tiled N and K). -------
    k2 = jax.random.PRNGKey(1)
    kx2, kw2, ka2, kb2 = jax.random.split(k2, 4)
    in2, out2, rank2, alpha2 = 256, 384, 4, 2.0
    x2 = jax.random.normal(kx2, (2, 80, in2), dtype=jnp.float32)          # M=160
    w2 = jax.random.normal(kw2, (out2, in2), dtype=jnp.float32) * 0.02
    a2 = jax.random.normal(ka2, (rank2, in2), dtype=jnp.float32) * 0.02
    b2 = jax.random.normal(kb2, (out2, rank2), dtype=jnp.float32) * 0.02

    params2 = qlora_prepare(w2, a2, b2, alpha2, tn=128, tk=128)
    out2_k = jax.block_until_ready(qlora_linear(x2, params2, tm=64))      # grid (3,3,2)

    ref2 = _reference(x2, w2, a2, b2, alpha2)
    assert out2_k.shape == ref2.shape
    assert jnp.allclose(out2_k, ref2, atol=1e-4, rtol=1e-4)

    print("KERNEL_OK")
</pallas_src>

<mosaic_0001>
module attributes {stable_mosaic.version = 11 : i64} {
  func.func @_qlora_kernel(%arg0: i32, %arg1: i32, %arg2: i32, %arg3: memref<16x128xf32, #tpu.memory_space<vmem>>, %arg4: memref<128x128xf32, #tpu.memory_space<vmem>>, %arg5: memref<128x128xf32, #tpu.memory_space<vmem>>, %arg6: memref<128x128xf32, #tpu.memory_space<vmem>>, %arg7: memref<16x128xf32, #tpu.memory_space<vmem>>, %arg8: memref<16x128xf32, #tpu.memory_space<vmem>>, %arg9: memref<16x128xf32, #tpu.memory_space<vmem>>) attributes {dimension_semantics = [#tpu.dimension_semantics<parallel>, #tpu.dimension_semantics<arbitrary>, #tpu.dimension_semantics<arbitrary>], iteration_bounds = array<i64: 1, 1, 1>, scalar_prefetch = 0 : i64, scratch_operands = 2 : i64, tpu.core_type = #tpu.core_type<tc>, window_params = [{transform_indices = @transform_0, window_bounds = array<i64: 16, 128>}, {transform_indices = @transform_1, window_bounds = array<i64: 128, 128>}, {pipeline_mode = #tpu.pipeline_mode<synchronous>, transform_indices = @transform_2, window_bounds = array<i64: 128, 128>}, {transform_indices = @transform_3, window_bounds = array<i64: 128, 128>}, {transform_indices = @transform_4, window_bounds = array<i64: 16, 128>}]} {
    %c0_i32 = arith.constant 0 : i32
    %0 = arith.cmpi eq, %arg2, %c0_i32 : i32
    %1 = arith.extui %0 : i1 to i32
    %c0_i32_0 = arith.constant 0 : i32
    %2 = arith.cmpi ne, %1, %c0_i32_0 : i32
    scf.if %2 {
      %cst_15 = arith.constant 0.000000e+00 : f32
      %20 = vector.broadcast %cst_15 : f32 to vector<16x128xf32>
      %c0_16 = arith.constant 0 : index
      %c0_17 = arith.constant 0 : index
      %21 = vector.load %arg8[%c0_16, %c0_17] : memref<16x128xf32, #tpu.memory_space<vmem>>, vector<16x128xf32>
      tpu.vector_store %arg8[%c0_16, %c0_17], %20 {strides = array<i32>} : memref<16x128xf32, #tpu.memory_space<vmem>>, vector<16x128xf32>,
    } else {
    }
    %c0_i32_1 = arith.constant 0 : i32
    %3 = arith.cmpi eq, %arg1, %c0_i32_1 : i32
    %c0_i32_2 = arith.constant 0 : i32
    %4 = arith.cmpi eq, %arg2, %c0_i32_2 : i32
    %5 = arith.andi %3, %4 : i1
    %6 = arith.extui %5 : i1 to i32
    %c0_i32_3 = arith.constant 0 : i32
    %7 = arith.cmpi ne, %6, %c0_i32_3 : i32
    scf.if %7 {
      %cst_15 = arith.constant 0.000000e+00 : f32
      %20 = vector.broadcast %cst_15 : f32 to vector<16x128xf32>
      %c0_16 = arith.constant 0 : index
      %c0_17 = arith.constant 0 : index
      %21 = vector.load %arg9[%c0_16, %c0_17] : memref<16x128xf32, #tpu.memory_space<vmem>>, vector<16x128xf32>
      tpu.vector_store %arg9[%c0_16, %c0_17], %20 {strides = array<i32>} : memref<16x128xf32, #tpu.memory_space<vmem>>, vector<16x128xf32>,
    } else {
    }
    %c0 = arith.constant 0 : index
    %c0_4 = arith.constant 0 : index
    %8 = vector.load %arg3[%c0, %c0_4] : memref<16x128xf32, #tpu.memory_space<vmem>>, vector<16x128xf32>
    %c0_5 = arith.constant 0 : index
    %c0_6 = arith.constant 0 : index
    %9 = vector.load %arg8[%c0_5, %c0_6] : memref<16x128xf32, #tpu.memory_space<vmem>>, vector<16x128xf32>
    %c0_7 = arith.constant 0 : index
    %c0_8 = arith.constant 0 : index
    %10 = vector.load %arg4[%c0_7, %c0_8] : memref<128x128xf32, #tpu.memory_space<vmem>>, vector<128x128xf32>
    %cst = arith.constant dense<0.000000e+00> : vector<16x128xf32>
    %11 = tpu.matmul %8, %10, %cst {dimension_numbers = #tpu.dot_dimension_numbers<[1], [0], [0], [1], [0, 0, 1, 1], [], []>} : vector<16x128xf32>, vector<128x128xf32>, vector<16x128xf32> -> vector<16x128xf32>
    %12 = arith.addf %9, %11 : vector<16x128xf32>
    %c0_9 = arith.constant 0 : index
    %c0_10 = arith.constant 0 : index
    %13 = vector.load %arg8[%c0_9, %c0_10] : memref<16x128xf32, #tpu.memory_space<vmem>>, vector<16x128xf32>
    tpu.vector_store %arg8[%c0_9, %c0_10], %12 {strides = array<i32>} : memref<16x128xf32, #tpu.memory_space<vmem>>, vector<16x128xf32>,
    %c0_i32_11 = arith.constant 0 : i32
    %14 = arith.cmpi eq, %arg1, %c0_i32_11 : i32
    %15 = arith.extui %14 : i1 to i32
    %c0_i32_12 = arith.constant 0 : i32
    %16 = arith.cmpi ne, %15, %c0_i32_12 : i32
    scf.if %16 {
      %c128_i32 = arith.constant 128 : i32
      %20 = arith.muli %arg2, %c128_i32 : i32
      %21 = tpu.assume_multiple %20, 128 : i32
      %22 = arith.index_cast %21 : i32 to index
      %c0_15 = arith.constant 0 : index
      %23 = vector.load %arg5[%22, %c0_15] : memref<128x128xf32, #tpu.memory_space<vmem>>, vector<128x128xf32>
      %c0_16 = arith.constant 0 : index
      %c0_17 = arith.constant 0 : index
      %24 = vector.load %arg9[%c0_16, %c0_17] : memref<16x128xf32, #tpu.memory_space<vmem>>, vector<16x128xf32>
      %cst_18 = arith.constant dense<0.000000e+00> : vector<16x128xf32>
      %25 = tpu.matmul %8, %23, %cst_18 {dimension_numbers = #tpu.dot_dimension_numbers<[1], [0], [0], [1], [0, 0, 1, 1], [], []>} : vector<16x128xf32>, vector<128x128xf32>, vector<16x128xf32> -> vector<16x128xf32>
      %26 = arith.addf %24, %25 : vector<16x128xf32>
      %c0_19 = arith.constant 0 : index
      %c0_20 = arith.constant 0 : index
      %27 = vector.load %arg9[%c0_19, %c0_20] : memref<16x128xf32, #tpu.memory_space<vmem>>, vector<16x128xf32>
      tpu.vector_store %arg9[%c0_19, %c0_20], %26 {strides = array<i32>} : memref<16x128xf32, #tpu.memory_space<vmem>>, vector<16x128xf32>,
    } else {
    }
    %c0_i32_13 = arith.constant 0 : i32
    %17 = arith.cmpi eq, %arg2, %c0_i32_13 : i32
    %18 = arith.extui %17 : i1 to i32
    %c0_i32_14 = arith.constant 0 : i32
    %19 = arith.cmpi ne, %18, %c0_i32_14 : i32
    scf.if %19 {
      %c0_15 = arith.constant 0 : index
      %c0_16 = arith.constant 0 : index
      %20 = vector.load %arg9[%c0_15, %c0_16] : memref<16x128xf32, #tpu.memory_space<vmem>>, vector<16x128xf32>
      %c0_17 = arith.constant 0 : index
      %c0_18 = arith.constant 0 : index
      %21 = vector.load %arg6[%c0_17, %c0_18] : memref<128x128xf32, #tpu.memory_space<vmem>>, vector<128x128xf32>
      %cst_19 = arith.constant dense<0.000000e+00> : vector<16x128xf32>
      %22 = tpu.matmul %20, %21, %cst_19 {dimension_numbers = #tpu.dot_dimension_numbers<[1], [0], [0], [1], [0, 0, 1, 1], [], []>} : vector<16x128xf32>, vector<128x128xf32>, vector<16x128xf32> -> vector<16x128xf32>
      %c0_20 = arith.constant 0 : index
      %c0_21 = arith.constant 0 : index
      %23 = vector.load %arg8[%c0_20, %c0_21] : memref<16x128xf32, #tpu.memory_space<vmem>>, vector<16x128xf32>
      %cst_22 = arith.constant 1.600000e+01 : f32
      %24 = vector.broadcast %cst_22 : f32 to vector<16x128xf32>
      %25 = arith.mulf %24, %22 : vector<16x128xf32>
      %26 = arith.addf %23, %25 : vector<16x128xf32>
      %c0_23 = arith.constant 0 : index
      %c0_24 = arith.constant 0 : index
      %27 = vector.load %arg7[%c0_23, %c0_24] : memref<16x128xf32, #tpu.memory_space<vmem>>, vector<16x128xf32>
      tpu.vector_store %arg7[%c0_23, %c0_24], %26 {strides = array<i32>} : memref<16x128xf32, #tpu.memory_space<vmem>>, vector<16x128xf32>,
    } else {
    }
    return
  }
  func.func @transform_0(%arg0: i32, %arg1: i32, %arg2: i32) -> (i32, i32) {
    %c0_i32 = arith.constant 0 : i32
    return %arg0, %arg2 : i32, i32
  }
  func.func @transform_1(%arg0: i32, %arg1: i32, %arg2: i32) -> (i32, i32) {
    %c0_i32 = arith.constant 0 : i32
    return %arg2, %arg1 : i32, i32
  }
  func.func @transform_2(%arg0: i32, %arg1: i32, %arg2: i32) -> (i32, i32) {
    %c0_i32 = arith.constant 0 : i32
    %c0_i32_0 = arith.constant 0 : i32
    %c0_i32_1 = arith.constant 0 : i32
    return %c0_i32, %c0_i32_0 : i32, i32
  }
  func.func @transform_3(%arg0: i32, %arg1: i32, %arg2: i32) -> (i32, i32) {
    %c0_i32 = arith.constant 0 : i32
    %c0_i32_0 = arith.constant 0 : i32
    return %c0_i32, %arg1 : i32, i32
  }
  func.func @transform_4(%arg0: i32, %arg1: i32, %arg2: i32) -> (i32, i32) {
    %c0_i32 = arith.constant 0 : i32
    return %arg0, %arg1 : i32, i32
  }
}

</mosaic_0001>

<llo_original>
// kernel: tpu_custom_call.1
$region0: #{tpu_custom_call.1}
  #allocation0 [shape = 'u32[]', space=smem, size = 0x4, offset = 0x4, fixed_abs, tag = 'smem constant byte address 0x4 - core index']
  #allocation1 [shape = 'u32[144,128]{1,0:T(1,128)}', space=vmem, size = 0x12000, scoped, tag = 'internal scratch']
  #allocation2 [shape = 'f32[16,128]{1,0:T(8,128)}', space=vmem, size = 0x2000, scoped, tag = 'scratch operand']
  #allocation3 [shape = 'f32[16,128]{1,0:T(8,128)}', space=vmem, size = 0x2000, scoped, tag = 'scratch operand']
  %s0 = inlined_call_operand.hbm [shape: f32[16,128], index: 0, kind: input, shape index: {}]
  %s1 = inlined_call_operand.hbm [shape: f32[128,128], index: 1, kind: input, shape index: {}]
  %s2 = inlined_call_operand.hbm [shape: f32[128,128], index: 2, kind: input, shape index: {}]
  %s3 = inlined_call_operand.hbm [shape: f32[128,128], index: 3, kind: input, shape index: {}]
  %s4 = inlined_call_operand.hbm [shape: f32[16,128], index: 4, kind: output, shape index: {}]
  %s5 = sld [smem:[#allocation0]]
  $region58: #{tpu_custom_call.1} parent=0
    _
  %s7 = ssub.s32 1, %s5
  %s8 = scalar_select 0, %s7, %s5
  $region1: #{tpu_custom_call.1} parent=0
    #allocation4 [shape = 'u8[8192]{0}', space=vmem, size = 0x2000, scoped, tag = 'input window, operand 0, single buffered']
    #allocation5 [shape = 's32[1]{0}', space=sflag, size = 0x4, scoped, tag = 'scoped memory for tpu_custom_call.1']
    #allocation6 [shape = 's32[1]{0}', space=sflag, size = 0x4, scoped, tag = 'scoped memory for tpu_custom_call.1']
    #allocation7 [shape = 'u8[65536]{0}', space=vmem, size = 0x10000, scoped, tag = 'input window, operand 1, single buffered']
    #allocation8 [shape = 's32[1]{0}', space=sflag, size = 0x4, scoped, tag = 'scoped memory for tpu_custom_call.1']
    #allocation9 [shape = 'u8[65536]{0}', space=vmem, size = 0x10000, scoped, tag = 'input window, operand 2, single buffered']
    #allocation10 [shape = 'u8[65536]{0}', space=vmem, size = 0x10000, scoped, tag = 'input window, operand 3, single buffered']
    #allocation11 [shape = 's32[1]{0}', space=sflag, size = 0x4, scoped, tag = 'scoped memory for tpu_custom_call.1']
    #allocation12 [shape = 'u8[8192]{0}', space=vmem, size = 0x2000, scoped, tag = 'output window, operand 0, single buffered']
    %9 = vsyncpa [#allocation5], 0
    %10 = vsyncpa [#allocation8], 0
    %11 = vsyncpa [#allocation11], 0
    %12 = vsyncpa [#allocation6], 0
    // Predicated region
    $region2: #{tpu_custom_call.1} parent=1 // pred_check
      _
    $region3: #{tpu_custom_call.1} parent=1 // pred_check_branch
      %14 = sbr.rel (0) target = $region5
    $region4: #{tpu_custom_call.1} parent=1 // pred_region
      %s16 = ssub.s32 256, 256
      %17 = vsyncadd [#allocation5], %s16
      %s18 = sshll.u32 [#allocation4], 4
      %s19 = int_to_ptr.vmem [resolvable:$true] %s18
      %24 = dma.hbm_to_vmem [thread:$0]  %s0, 256, %s19, [#allocation5], 128, 128, 8
    $region5: #{tpu_custom_call.1} parent=1 // pred_fallthru
      _
    // Predicated region
    $region6: #{tpu_custom_call.1} parent=1 // pred_check
      _
    $region7: #{tpu_custom_call.1} parent=1 // pred_check_branch
      %26 = sbr.rel (0) target = $region9
    $region8: #{tpu_custom_call.1} parent=1 // pred_region
      %s28 = ssub.s32 2048, 2048
      %29 = vsyncadd [#allocation8], %s28
      %s30 = sshll.u32 [#allocation7], 4
      %s31 = int_to_ptr.vmem [resolvable:$true] %s30
      %36 = dma.hbm_to_vmem [thread:$0]  %s1, 2048, %s31, [#allocation8], 128, 128, 8
    $region9: #{tpu_custom_call.1} parent=1 // pred_fallthru
      _
    // Predicated region
    $region10: #{tpu_custom_call.1} parent=1 // pred_check
      _
    $region11: #{tpu_custom_call.1} parent=1 // pred_check_branch
      %38 = sbr.rel (0) target = $region13
    $region12: #{tpu_custom_call.1} parent=1 // pred_region
      %s40 = ssub.s32 2048, 2048
      %41 = vsyncadd [#allocation8], %s40
      %s42 = sshll.u32 [#allocation9], 4
      %s43 = int_to_ptr.vmem [resolvable:$true] %s42
      %48 = dma.hbm_to_vmem [thread:$0]  %s2, 2048, %s43, [#allocation8], 128, 128, 8
    $region13: #{tpu_custom_call.1} parent=1 // pred_fallthru
      _
    // Predicated region
    $region14: #{tpu_custom_call.1} parent=1 // pred_check
      _
    $region15: #{tpu_custom_call.1} parent=1 // pred_check_branch
      %50 = sbr.rel (0) target = $region17
    $region16: #{tpu_custom_call.1} parent=1 // pred_region
      %s52 = ssub.s32 2048, 2048
      %53 = vsyncadd [#allocation11], %s52
      %s54 = sshll.u32 [#allocation10], 4
      %s55 = int_to_ptr.vmem [resolvable:$true] %s54
      %60 = dma.hbm_to_vmem [thread:$0]  %s3, 2048, %s55, [#allocation11], 128, 128, 8
    $region17: #{tpu_custom_call.1} parent=1 // pred_fallthru
      _
    // Predicated region
    $region18: #{tpu_custom_call.1} parent=1 // pred_check
      _
    $region19: #{tpu_custom_call.1} parent=1 // pred_check_branch
      %62 = sbr.rel (0) target = $region21
    $region20: #{tpu_custom_call.1} parent=1 // pred_region
      %63 = dma.done [#allocation5], 256
    $region21: #{tpu_custom_call.1} parent=1 // pred_fallthru
      _
    // Predicated region
    $region22: #{tpu_custom_call.1} parent=1 // pred_check
      _
    $region23: #{tpu_custom_call.1} parent=1 // pred_check_branch
      %65 = sbr.rel (0) target = $region25
    $region24: #{tpu_custom_call.1} parent=1 // pred_region
      %66 = dma.done [#allocation8], 2048
    $region25: #{tpu_custom_call.1} parent=1 // pred_fallthru
      _
    // Predicated region
    $region26: #{tpu_custom_call.1} parent=1 // pred_check
      _
    $region27: #{tpu_custom_call.1} parent=1 // pred_check_branch
      %68 = sbr.rel (0) target = $region29
    $region28: #{tpu_custom_call.1} parent=1 // pred_region
      %69 = dma.done [#allocation8], 2048
    $region29: #{tpu_custom_call.1} parent=1 // pred_fallthru
      _
    // Predicated region
    $region30: #{tpu_custom_call.1} parent=1 // pred_check
      _
    $region31: #{tpu_custom_call.1} parent=1 // pred_check_branch
      %71 = sbr.rel (0) target = $region33
    $region32: #{tpu_custom_call.1} parent=1 // pred_region
      %72 = dma.done [#allocation11], 2048
    $region33: #{tpu_custom_call.1} parent=1 // pred_fallthru
      _
    %p73 = scmp.eq.s32.totalorder 0, 0
    // Predicated region
    $region34: #{tpu_custom_call.1} parent=1 // pred_check
      %p74 = pneg %p73
    $region35: #{tpu_custom_call.1} parent=1 // pred_check_branch
      %76 = sbr.rel (%p74) target = $region37
    $region36: #{tpu_custom_call.1} parent=1 // pred_region
      %77 = vst [vmem:[#allocation2] sm:$0xff] 0.0
      %78 = vst [vmem:[#allocation2 + $0x8] sm:$0xff] 0.0
    $region37: #{tpu_custom_call.1} parent=1 // pred_fallthru
      _
    %p79 = scmp.eq.s32.totalorder 0, 0
    %p80 = pnand %p79, %p73
    %p81 = pneg %p80
    // Predicated region
    $region38: #{tpu_custom_call.1} parent=1 // pred_check
      _
    $region39: #{tpu_custom_call.1} parent=1 // pred_check_branch
      %83 = sbr.rel (%p80) target = $region41
    $region40: #{tpu_custom_call.1} parent=1 // pred_region
      %84 = vst [vmem:[#allocation3] sm:$0xff] 0.0
      %85 = vst [vmem:[#allocation3 + $0x8] sm:$0xff] 0.0
    $region41: #{tpu_custom_call.1} parent=1 // pred_fallthru
      _
    %v86 = vld [vmem:[#allocation4] sm:$0xff]
    %v87 = vld [vmem:[#allocation4 + $0x8] sm:$0xff]
    %v88 = vld [vmem:[#allocation2] sm:$0xff]
    %v89 = vld [vmem:[#allocation2 + $0x8] sm:$0xff]
    %v90 = vld [vmem:[#allocation7] sm:$0xff]
    %v91 = vld [vmem:[#allocation7 + $0x8] sm:$0xff]
    %v92 = vld [vmem:[#allocation7 + $0x10] sm:$0xff]
    %v93 = vld [vmem:[#allocation7 + $0x18] sm:$0xff]
    %v94 = vld [vmem:[#allocation7 + $0x20] sm:$0xff]
    %v95 = vld [vmem:[#allocation7 + $0x28] sm:$0xff]
    %v96 = vld [vmem:[#allocation7 + $0x30] sm:$0xff]
    %v97 = vld [vmem:[#allocation7 + $0x38] sm:$0xff]
    %v98 = vld [vmem:[#allocation7 + $0x40] sm:$0xff]
    %v99 = vld [vmem:[#allocation7 + $0x48] sm:$0xff]
    %v100 = vld [vmem:[#allocation7 + $0x50] sm:$0xff]
    %v101 = vld [vmem:[#allocation7 + $0x58] sm:$0xff]
    %v102 = vld [vmem:[#allocation7 + $0x60] sm:$0xff]
    %v103 = vld [vmem:[#allocation7 + $0x68] sm:$0xff]
    %v104 = vld [vmem:[#allocation7 + $0x70] sm:$0xff]
    %v105 = vld [vmem:[#allocation7 + $0x78] sm:$0xff]
    %106 = vmatprep.subr.mxu0 0.0
    %107 = vmatpush1.msra.mxu0 %v90
    %108 = vmatprep.subr.mxu0 0.0
    %109 = vmatpush1.msra.mxu0 %v91
    %110 = vmatprep.subr.mxu0 0.0
    %111 = vmatpush1.msra.mxu0 %v92
    %112 = vmatprep.subr.mxu0 0.0
    %113 = vmatpush1.msra.mxu0 %v93
    %114 = vmatprep.subr.mxu0 0.0
    %115 = vmatpush1.msra.mxu0 %v94
    %116 = vmatprep.subr.mxu0 0.0
    %117 = vmatpush1.msra.mxu0 %v95
    %118 = vmatprep.subr.mxu0 0.0
    %119 = vmatpush1.msra.mxu0 %v96
    %120 = vmatprep.subr.mxu0 0.0
    %121 = vmatpush1.msra.mxu0 %v97
    %122 = vmatprep.subr.mxu0 0.0
    %123 = vmatpush1.msra.mxu0 %v98
    %124 = vmatprep.subr.mxu0 0.0
    %125 = vmatpush1.msra.mxu0 %v99
    %126 = vmatprep.subr.mxu0 0.0
    %127 = vmatpush1.msra.mxu0 %v100
    %128 = vmatprep.subr.mxu0 0.0
    %129 = vmatpush1.msra.mxu0 %v101
    %130 = vmatprep.subr.mxu0 0.0
    %131 = vmatpush1.msra.mxu0 %v102
    %132 = vmatprep.subr.mxu0 0.0
    %133 = vmatpush1.msra.mxu0 %v103
    %134 = vmatprep.subr.mxu0 0.0
    %135 = vmatpush1.msra.mxu0 %v104
    %136 = vmatprep.subr.mxu0 0.0
    %137 = vmatpush1.msra.mxu0 %v105
    %138 = vmatprep.subr.mxu0 0.0
    %139 = vmatpush1.msra.mxu0 0.0
    %140 = vmatprep.subr.mxu0 0.0
    %141 = vmatpush1.msra.mxu0 0.0
    %142 = vmatprep.subr.mxu0 0.0
    %143 = vmatpush1.msra.mxu0 0.0
    %144 = vmatprep.subr.mxu0 0.0
    %145 = vmatpush1.msra.mxu0 0.0
    %146 = vmatprep.subr.mxu0 0.0
    %147 = vmatpush1.msra.mxu0 0.0
    %148 = vmatprep.subr.mxu0 0.0
    %149 = vmatpush1.msra.mxu0 0.0
    %150 = vmatprep.subr.mxu0 0.0
    %151 = vmatpush1.msra.mxu0 0.0
    %152 = vmatprep.subr.mxu0 0.0
    %153 = vmatpush1.msra.mxu0 0.0
    %154 = vmatprep.subr.mxu0 0.0
    %155 = vmatpush1.msra.mxu0 0.0
    %156 = vmatprep.subr.mxu0 0.0
    %157 = vmatpush1.msra.mxu0 0.0
    %158 = vmatprep.subr.mxu0 0.0
    %159 = vmatpush1.msra.mxu0 0.0
    %160 = vmatprep.subr.mxu0 0.0
    %161 = vmatpush1.msra.mxu0 0.0
    %162 = vmatprep.subr.mxu0 0.0
    %163 = vmatpush1.msra.mxu0 0.0
    %164 = vmatprep.subr.mxu0 0.0
    %165 = vmatpush1.msra.mxu0 0.0
    %166 = vmatprep.subr.mxu0 0.0
    %167 = vmatpush1.msra.mxu0 0.0
    %168 = vmatprep.subr.mxu0 0.0
    %169 = vmatpush1.msra.mxu0 0.0
    %170 = vmatprep.mubr.f32.mxu0 0.0
    %171 = vmatmul.mubr.f32.gmra.mrb[0].mxu0 %v86
    %v172 = vpop.f32.mrb[0].mxu0
    %v173 = vadd.f32 0.0, %v172
    %v174 = vpop.f32.mrb[0].mxu0
    %175 = vmatprep.mubr.f32.mxu0 0.0
    %176 = vmatmul.mubr.f32.gmra.mrb[0].mxu0 %v87
    %v177 = vpop.f32.mrb[0].mxu0
    %v178 = vadd.f32 0.0, %v177
    %v179 = vpop.f32.mrb[0].mxu0
    %180 = vdwg.mxu0
    %v181 = vadd.f32 %v88, %v173
    %v182 = vadd.f32 %v89, %v178
    %183 = vst [vmem:[#allocation2] sm:$0xff] %v181
    %184 = vst [vmem:[#allocation2 + $0x8] sm:$0xff] %v182
    // Predicated region
    $region42: #{tpu_custom_call.1} parent=1 // pred_check
      %p185 = pneg %p79
    $region43: #{tpu_custom_call.1} parent=1 // pred_check_branch
      %187 = sbr.rel (%p185) target = $region45
    $region44: #{tpu_custom_call.1} parent=1 // pred_region
      %s188 = smul.u32 0, 128
      %s189 = scalar_lea.vmem [#allocation9], %s188
      %v190 = vld [vmem:[%s189] sm:$0xff]
      %v191 = vld [vmem:[%s189 + $0x8] sm:$0xff]
      %v192 = vld [vmem:[%s189 + $0x10] sm:$0xff]
      %v193 = vld [vmem:[%s189 + $0x18] sm:$0xff]
      %v194 = vld [vmem:[%s189 + $0x20] sm:$0xff]
      %v195 = vld [vmem:[%s189 + $0x28] sm:$0xff]
      %v196 = vld [vmem:[%s189 + $0x30] sm:$0xff]
      %v197 = vld [vmem:[%s189 + $0x38] sm:$0xff]
      %v198 = vld [vmem:[%s189 + $0x40] sm:$0xff]
      %v199 = vld [vmem:[%s189 + $0x48] sm:$0xff]
      %v200 = vld [vmem:[%s189 + $0x50] sm:$0xff]
      %v201 = vld [vmem:[%s189 + $0x58] sm:$0xff]
      %v202 = vld [vmem:[%s189 + $0x60] sm:$0xff]
      %v203 = vld [vmem:[%s189 + $0x68] sm:$0xff]
      %v204 = vld [vmem:[%s189 + $0x70] sm:$0xff]
      %v205 = vld [vmem:[%s189 + $0x78] sm:$0xff]
      %v206 = vld [vmem:[#allocation3] sm:$0xff]
      %v207 = vld [vmem:[#allocation3 + $0x8] sm:$0xff]
      %208 = vmatprep.subr.mxu0 0.0
      %209 = vmatpush1.msra.mxu0 %v190
      %210 = vmatprep.subr.mxu0 0.0
      %211 = vmatpush1.msra.mxu0 %v191
      %212 = vmatprep.subr.mxu0 0.0
      %213 = vmatpush1.msra.mxu0 %v192
      %214 = vmatprep.subr.mxu0 0.0
      %215 = vmatpush1.msra.mxu0 %v193
      %216 = vmatprep.subr.mxu0 0.0
      %217 = vmatpush1.msra.mxu0 %v194
      %218 = vmatprep.subr.mxu0 0.0
      %219 = vmatpush1.msra.mxu0 %v195
      %220 = vmatprep.subr.mxu0 0.0
      %221 = vmatpush1.msra.mxu0 %v196
      %222 = vmatprep.subr.mxu0 0.0
      %223 = vmatpush1.msra.mxu0 %v197
      %224 = vmatprep.subr.mxu0 0.0
      %225 = vmatpush1.msra.mxu0 %v198
      %226 = vmatprep.subr.mxu0 0.0
      %227 = vmatpush1.msra.mxu0 %v199
      %228 = vmatprep.subr.mxu0 0.0
      %229 = vmatpush1.msra.mxu0 %v200
      %230 = vmatprep.subr.mxu0 0.0
      %231 = vmatpush1.msra.mxu0 %v201
      %232 = vmatprep.subr.mxu0 0.0
      %233 = vmatpush1.msra.mxu0 %v202
      %234 = vmatprep.subr.mxu0 0.0
      %235 = vmatpush1.msra.mxu0 %v203
      %236 = vmatprep.subr.mxu0 0.0
      %237 = vmatpush1.msra.mxu0 %v204
      %238 = vmatprep.subr.mxu0 0.0
      %239 = vmatpush1.msra.mxu0 %v205
      %240 = vmatprep.subr.mxu0 0.0
      %241 = vmatpush1.msra.mxu0 0.0
      %242 = vmatprep.subr.mxu0 0.0
      %243 = vmatpush1.msra.mxu0 0.0
      %244 = vmatprep.subr.mxu0 0.0
      %245 = vmatpush1.msra.mxu0 0.0
      %246 = vmatprep.subr.mxu0 0.0
      %247 = vmatpush1.msra.mxu0 0.0
      %248 = vmatprep.subr.mxu0 0.0
      %249 = vmatpush1.msra.mxu0 0.0
      %250 = vmatprep.subr.mxu0 0.0
      %251 = vmatpush1.msra.mxu0 0.0
      %252 = vmatprep.subr.mxu0 0.0
      %253 = vmatpush1.msra.mxu0 0.0
      %254 = vmatprep.subr.mxu0 0.0
      %255 = vmatpush1.msra.mxu0 0.0
      %256 = vmatprep.subr.mxu0 0.0
      %257 = vmatpush1.msra.mxu0 0.0
      %258 = vmatprep.subr.mxu0 0.0
      %259 = vmatpush1.msra.mxu0 0.0
      %260 = vmatprep.subr.mxu0 0.0
      %261 = vmatpush1.msra.mxu0 0.0
      %262 = vmatprep.subr.mxu0 0.0
      %263 = vmatpush1.msra.mxu0 0.0
      %264 = vmatprep.subr.mxu0 0.0
      %265 = vmatpush1.msra.mxu0 0.0
      %266 = vmatprep.subr.mxu0 0.0
      %267 = vmatpush1.msra.mxu0 0.0
      %268 = vmatprep.subr.mxu0 0.0
      %269 = vmatpush1.msra.mxu0 0.0
      %270 = vmatprep.subr.mxu0 0.0
      %271 = vmatpush1.msra.mxu0 0.0
      %272 = vmatprep.mubr.f32.mxu0 0.0
      %273 = vmatmul.mubr.f32.gmra.mrb[0].mxu0 %v86
      %v274 = vpop.f32.mrb[0].mxu0
      %v275 = vadd.f32 0.0, %v274
      %v276 = vpop.f32.mrb[0].mxu0
      %277 = vmatprep.mubr.f32.mxu0 0.0
      %278 = vmatmul.mubr.f32.gmra.mrb[0].mxu0 %v87
      %v279 = vpop.f32.mrb[0].mxu0
      %v280 = vadd.f32 0.0, %v279
      %v281 = vpop.f32.mrb[0].mxu0
      %282 = vdwg.mxu0
      %v283 = vadd.f32 %v206, %v275
      %v284 = vadd.f32 %v207, %v280
      %285 = vst [vmem:[#allocation3] sm:$0xff] %v283
      %286 = vst [vmem:[#allocation3 + $0x8] sm:$0xff] %v284
    $region45: #{tpu_custom_call.1} parent=1 // pred_fallthru
      _
    // Predicated region
    $region46: #{tpu_custom_call.1} parent=1 // pred_check
      %p287 = pneg %p73
    $region47: #{tpu_custom_call.1} parent=1 // pred_check_branch
      %289 = sbr.rel (%p287) target = $region49
    $region48: #{tpu_custom_call.1} parent=1 // pred_region
      %v290 = vld [vmem:[#allocation3] sm:$0xff]
      %v291 = vld [vmem:[#allocation3 + $0x8] sm:$0xff]
      %v292 = vld [vmem:[#allocation10] sm:$0xff]
      %v293 = vld [vmem:[#allocation10 + $0x8] sm:$0xff]
      %v294 = vld [vmem:[#allocation10 + $0x10] sm:$0xff]
      %v295 = vld [vmem:[#allocation10 + $0x18] sm:$0xff]
      %v296 = vld [vmem:[#allocation10 + $0x20] sm:$0xff]
      %v297 = vld [vmem:[#allocation10 + $0x28] sm:$0xff]
      %v298 = vld [vmem:[#allocation10 + $0x30] sm:$0xff]
      %v299 = vld [vmem:[#allocation10 + $0x38] sm:$0xff]
      %v300 = vld [vmem:[#allocation10 + $0x40] sm:$0xff]
      %v301 = vld [vmem:[#allocation10 + $0x48] sm:$0xff]
      %v302 = vld [vmem:[#allocation10 + $0x50] sm:$0xff]
      %v303 = vld [vmem:[#allocation10 + $0x58] sm:$0xff]
      %v304 = vld [vmem:[#allocation10 + $0x60] sm:$0xff]
      %v305 = vld [vmem:[#allocation10 + $0x68] sm:$0xff]
      %v306 = vld [vmem:[#allocation10 + $0x70] sm:$0xff]
      %v307 = vld [vmem:[#allocation10 + $0x78] sm:$0xff]
      %308 = vmatprep.subr.mxu0 0.0
      %309 = vmatpush1.msra.mxu0 %v292
      %310 = vmatprep.subr.mxu0 0.0
      %311 = vmatpush1.msra.mxu0 %v293
      %312 = vmatprep.subr.mxu0 0.0
      %313 = vmatpush1.msra.mxu0 %v294
      %314 = vmatprep.subr.mxu0 0.0
      %315 = vmatpush1.msra.mxu0 %v295
      %316 = vmatprep.subr.mxu0 0.0
      %317 = vmatpush1.msra.mxu0 %v296
      %318 = vmatprep.subr.mxu0 0.0
      %319 = vmatpush1.msra.mxu0 %v297
      %320 = vmatprep.subr.mxu0 0.0
      %321 = vmatpush1.msra.mxu0 %v298
      %322 = vmatprep.subr.mxu0 0.0
      %323 = vmatpush1.msra.mxu0 %v299
      %324 = vmatprep.subr.mxu0 0.0
      %325 = vmatpush1.msra.mxu0 %v300
      %326 = vmatprep.subr.mxu0 0.0
      %327 = vmatpush1.msra.mxu0 %v301
      %328 = vmatprep.subr.mxu0 0.0
      %329 = vmatpush1.msra.mxu0 %v302
      %330 = vmatprep.subr.mxu0 0.0
      %331 = vmatpush1.msra.mxu0 %v303
      %332 = vmatprep.subr.mxu0 0.0
      %333 = vmatpush1.msra.mxu0 %v304
      %334 = vmatprep.subr.mxu0 0.0
      %335 = vmatpush1.msra.mxu0 %v305
      %336 = vmatprep.subr.mxu0 0.0
      %337 = vmatpush1.msra.mxu0 %v306
      %338 = vmatprep.subr.mxu0 0.0
      %339 = vmatpush1.msra.mxu0 %v307
      %340 = vmatprep.subr.mxu0 0.0
      %341 = vmatpush1.msra.mxu0 0.0
      %342 = vmatprep.subr.mxu0 0.0
      %343 = vmatpush1.msra.mxu0 0.0
      %344 = vmatprep.subr.mxu0 0.0
      %345 = vmatpush1.msra.mxu0 0.0
      %346 = vmatprep.subr.mxu0 0.0
      %347 = vmatpush1.msra.mxu0 0.0
      %348 = vmatprep.subr.mxu0 0.0
      %349 = vmatpush1.msra.mxu0 0.0
      %350 = vmatprep.subr.mxu0 0.0
      %351 = vmatpush1.msra.mxu0 0.0
      %352 = vmatprep.subr.mxu0 0.0
      %353 = vmatpush1.msra.mxu0 0.0
      %354 = vmatprep.subr.mxu0 0.0
      %355 = vmatpush1.msra.mxu0 0.0
      %356 = vmatprep.subr.mxu0 0.0
      %357 = vmatpush1.msra.mxu0 0.0
      %358 = vmatprep.subr.mxu0 0.0
      %359 = vmatpush1.msra.mxu0 0.0
      %360 = vmatprep.subr.mxu0 0.0
      %361 = vmatpush1.msra.mxu0 0.0
      %362 = vmatprep.subr.mxu0 0.0
      %363 = vmatpush1.msra.mxu0 0.0
      %364 = vmatprep.subr.mxu0 0.0
      %365 = vmatpush1.msra.mxu0 0.0
      %366 = vmatprep.subr.mxu0 0.0
      %367 = vmatpush1.msra.mxu0 0.0
      %368 = vmatprep.subr.mxu0 0.0
      %369 = vmatpush1.msra.mxu0 0.0
      %370 = vmatprep.subr.mxu0 0.0
      %371 = vmatpush1.msra.mxu0 0.0
      %372 = vmatprep.mubr.f32.mxu0 0.0
      %373 = vmatmul.mubr.f32.gmra.mrb[0].mxu0 %v290
      %v374 = vpop.f32.mrb[0].mxu0
      %v375 = vadd.f32 0.0, %v374
      %v376 = vpop.f32.mrb[0].mxu0
      %377 = vmatprep.mubr.f32.mxu0 0.0
      %378 = vmatmul.mubr.f32.gmra.mrb[0].mxu0 %v291
      %v379 = vpop.f32.mrb[0].mxu0
      %v380 = vadd.f32 0.0, %v379
      %v381 = vpop.f32.mrb[0].mxu0
      %382 = vdwg.mxu0
      %v383 = vld [vmem:[#allocation2] sm:$0xff]
      %v384 = vld [vmem:[#allocation2 + $0x8] sm:$0xff]
      %v385 = vmul.f32 %v375, 16.0
      %v386 = vmul.f32 %v380, 16.0
      %v387 = vadd.f32 %v383, %v385
      %v388 = vadd.f32 %v384, %v386
      %389 = vst [vmem:[#allocation12] sm:$0xff] %v387
      %390 = vst [vmem:[#allocation12 + $0x8] sm:$0xff] %v388
    $region49: #{tpu_custom_call.1} parent=1 // pred_fallthru
      _
    // Predicated region
    $region50: #{tpu_custom_call.1} parent=1 // pred_check
      _
    $region51: #{tpu_custom_call.1} parent=1 // pred_check_branch
      %392 = sbr.rel (0) target = $region53
    $region52: #{tpu_custom_call.1} parent=1 // pred_region
      %s394 = ssub.s32 256, 256
      %395 = vsyncadd [#allocation6], %s394
      %s396 = sshll.u32 [#allocation12], 4
      %s397 = int_to_ptr.vmem [resolvable:$true] %s396
      %402 = dma.vmem_to_hbm [thread:$0]  %s397, 256, %s4, [#allocation6], 128, 128, 8
    $region53: #{tpu_custom_call.1} parent=1 // pred_fallthru
      _
    // Predicated region
    $region54: #{tpu_custom_call.1} parent=1 // pred_check
      _
    $region55: #{tpu_custom_call.1} parent=1 // pred_check_branch
      %404 = sbr.rel (0) target = $region57
    $region56: #{tpu_custom_call.1} parent=1 // pred_region
      %405 = dma.done [#allocation6], 256
    $region57: #{tpu_custom_call.1} parent=1 // pred_fallthru
      _
    %406 = vsyncpa [#allocation5], 1
    %407 = vsyncpa [#allocation8], 1
    %408 = vsyncpa [#allocation11], 1
    %409 = vsyncpa [#allocation6], 1

</llo_original>
